<compile_context>
chip_gen: v6e
topology: v6e:2x2x1
jax: 0.10.0
libtpu: 0.0.40
codegen_flags: <defaults>
</compile_context>

<pallas_src>
import functools
import math

import jax
import jax.numpy as jnp
from jax.experimental import pallas as pl
from jax.experimental.pallas import tpu as pltpu


_FUSED_VMEM_BUDGET = 40 * 1024 * 1024   # safe on v5e/v6e (128 MiB) and v7x (64 MiB)


def _conv_sigmoid_gate(channel_sum, w_ref, kernel_size, inv_t):
    """channel_sum: (1, C, 1) f32 per-channel sums over T. w_ref: SMEM (k,) taps.

    Returns sigmoid(conv1d_k(mean over T)) as (1, C, 1) f32. The k-tap conv slides
    over the channel (sublane) axis with zero padding, realized as k statically
    shifted, zero-padded copies weighted by scalar taps (no matmul, no Wt matrix).
    """
    m = channel_sum * inv_t                               # (1, C, 1) f32 mean
    C = m.shape[1]
    pad = (kernel_size - 1) // 2
    if pad > 0:
        z = jnp.zeros((1, pad, 1), dtype=m.dtype)
        mp = jnp.concatenate([z, m, z], axis=1)           # (1, C + 2*pad, 1)
    else:
        mp = m
    y = jnp.zeros_like(m)
    for j in range(kernel_size):                          # static tiny loop (k taps)
        y = y + w_ref[j] * mp[:, j:j + C, :]              # out[c] += w[j]*m[c+j-pad]
    return jax.nn.sigmoid(y)                              # (1, C, 1) f32


# ---------------------------------------------------------------------------
# Path A: fused single pass (whole T per block) — 2x|x| HBM traffic.
# ---------------------------------------------------------------------------
def _eca_fused_kernel(w_ref, x_ref, o_ref, *, kernel_size, inv_t):
    x = x_ref[...]                                                    # (1, C, T)
    s = jnp.sum(x.astype(jnp.float32), axis=-1, keepdims=True)        # (1, C, 1) f32
    g = _conv_sigmoid_gate(s, w_ref, kernel_size, inv_t)              # (1, C, 1) f32
    o_ref[...] = x * g.astype(x.dtype)                                # lane-broadcast


def _eca_fused(x, conv_w, kernel_size, need_bytes):
    B, C, T = x.shape
    kern = functools.partial(_eca_fused_kernel,
                             kernel_size=kernel_size, inv_t=1.0 / T)
    ckw = dict(dimension_semantics=("parallel",))
    if need_bytes > 16 * 1024 * 1024:
        ckw["vmem_limit_bytes"] = _FUSED_VMEM_BUDGET
    return pl.pallas_call(
        kern,
        out_shape=jax.ShapeDtypeStruct((B, C, T), x.dtype),
        grid=(B,),
        in_specs=[
            pl.BlockSpec(memory_space=pltpu.MemorySpace.SMEM),        # conv taps (k,)
            pl.BlockSpec((1, C, T), lambda b: (b, 0, 0)),             # x
        ],
        out_specs=pl.BlockSpec((1, C, T), lambda b: (b, 0, 0)),
        compiler_params=pltpu.CompilerParams(**ckw),
    )(conv_w, x)


# ---------------------------------------------------------------------------
# Path B: tiled two-pass (gate reduction over T tiles, then multiply pass).
# ---------------------------------------------------------------------------
def _eca_gate_kernel(w_ref, x_ref, g_ref, acc_ref, *, kernel_size, inv_t):
    t = pl.program_id(1)

    @pl.when(t == 0)
    def _():
        acc_ref[...] = jnp.zeros_like(acc_ref)

    acc_ref[...] += jnp.sum(x_ref[...].astype(jnp.float32),
                            axis=-1, keepdims=True)                   # (1, C, 1) f32

    @pl.when(t == pl.num_programs(1) - 1)
    def _():
        g_ref[...] = _conv_sigmoid_gate(acc_ref[...], w_ref, kernel_size, inv_t)


def _eca_gate(x, conv_w, kernel_size, t_tile):
    B, C, T = x.shape
    nt = T // t_tile
    kern = functools.partial(_eca_gate_kernel,
                             kernel_size=kernel_size, inv_t=1.0 / T)
    return pl.pallas_call(
        kern,
        out_shape=jax.ShapeDtypeStruct((B, C, 1), jnp.float32),
        grid=(B, nt),
        in_specs=[
            pl.BlockSpec(memory_space=pltpu.MemorySpace.SMEM),        # conv taps (k,)
            pl.BlockSpec((1, C, t_tile), lambda b, t: (b, 0, t)),     # x tile
        ],
        out_specs=pl.BlockSpec((1, C, 1), lambda b, t: (b, 0, 0)),    # resident gate
        scratch_shapes=[pltpu.VMEM((1, C, 1), jnp.float32)],
        compiler_params=pltpu.CompilerParams(
            dimension_semantics=("parallel", "arbitrary")),
    )(conv_w, x)


def _eca_mul_kernel(x_ref, g_ref, o_ref):
    x = x_ref[...]                                                    # (1, C, tT)
    o_ref[...] = x * g_ref[...].astype(x.dtype)                       # lane-broadcast


def _eca_mul(x, gate, t_tile):
    B, C, T = x.shape
    nt = T // t_tile
    return pl.pallas_call(
        _eca_mul_kernel,
        out_shape=jax.ShapeDtypeStruct((B, C, T), x.dtype),
        grid=(B, nt),
        in_specs=[
            pl.BlockSpec((1, C, t_tile), lambda b, t: (b, 0, t)),     # x tile
            pl.BlockSpec((1, C, 1), lambda b, t: (b, 0, 0)),          # gate
        ],
        out_specs=pl.BlockSpec((1, C, t_tile), lambda b, t: (b, 0, t)),
        compiler_params=pltpu.CompilerParams(
            dimension_semantics=("parallel", "parallel")),
    )(x, gate)


def _pick_t_tile(T, max_tile):
    """Largest lane-dense (multiple-of-128) divisor of T <= max_tile, else T."""
    if T <= max_tile:
        return T
    for cand in range(max_tile - (max_tile % 128), 127, -128):
        if T % cand == 0:
            return cand
    return T


# ---------------------------------------------------------------------------
# Public wrapper.
# ---------------------------------------------------------------------------
def eca_attention(x, conv_w, kernel_size=3, *, max_t_tile=2048,
                  force_two_pass=False):
    """x: (B, C, T). conv_w: (kernel_size,) Conv1d(1,1,k,bias=False) taps."""
    B, C, T = x.shape
    conv_w = conv_w.astype(jnp.float32).reshape(kernel_size)

    block_bytes = C * T * x.dtype.itemsize
    need = 4 * block_bytes + (1 << 20)      # double-buffered in + out, plus slack
    if (not force_two_pass) and need <= _FUSED_VMEM_BUDGET:
        return _eca_fused(x, conv_w, kernel_size, need)

    t_tile = _pick_t_tile(T, max_t_tile)
    gate = _eca_gate(x, conv_w, kernel_size, t_tile)
    return _eca_mul(x, gate, t_tile)


def eca_reference(x, conv_w, kernel_size=3):
    """Pure-JAX reference matching the PyTorch forward."""
    pad = (kernel_size - 1) // 2
    m = jnp.mean(x.astype(jnp.float32), axis=-1)          # (B, C)
    mp = jnp.pad(m, ((0, 0), (pad, pad)))                 # zero pad over channels
    y = jnp.zeros_like(m)
    for k in range(kernel_size):
        y = y + conv_w[k] * mp[:, k:k + m.shape[1]]
    g = jax.nn.sigmoid(y)                                 # (B, C)
    return x * g[:, :, None].astype(x.dtype)


if __name__ == "__main__":
    key = jax.random.PRNGKey(0)
    kx, kw = jax.random.split(key)

    B, C, T = 2, 16, 256
    kernel_size = 3

    x = jax.random.normal(kx, (B, C, T), dtype=jnp.float32)

    # Deterministic Conv1d(1, 1, 3, bias=False) weight init (kaiming-uniform-like bound).
    bound = 1.0 / math.sqrt(1 * kernel_size)
    conv_w = jax.random.uniform(kw, (kernel_size,), minval=-bound, maxval=bound,
                                dtype=jnp.float32)

    ref = eca_reference(x, conv_w, kernel_size)

    # Fused single-pass path (auto-selected at this size).
    out_fused = eca_attention(x, conv_w, kernel_size)
    # Tiled two-pass path (forced, T tiled into 2 lane-dense 128-wide tiles).
    out_tiled = eca_attention(x, conv_w, kernel_size,
                              force_two_pass=True, max_t_tile=128)
    out_fused, out_tiled = jax.block_until_ready((out_fused, out_tiled))

    assert out_fused.shape == x.shape and out_fused.dtype == x.dtype
    assert out_tiled.shape == x.shape and out_tiled.dtype == x.dtype
    assert jnp.allclose(out_fused, ref, atol=1e-5, rtol=1e-5), "fused mismatch"
    assert jnp.allclose(out_tiled, ref, atol=1e-5, rtol=1e-5), "tiled mismatch"

    print("KERNEL_OK")
</pallas_src>

<mosaic_0001>
module attributes {stable_mosaic.version = 11 : i64} {
  func.func @_eca_fused_kernel(%arg0: i32, %arg1: memref<3xf32, #tpu.memory_space<smem>>, %arg2: memref<1x16x256xf32, #tpu.memory_space<vmem>>, %arg3: memref<1x16x256xf32, #tpu.memory_space<vmem>>) attributes {dimension_semantics = [#tpu.dimension_semantics<parallel>], iteration_bounds = array<i64: 2>, scalar_prefetch = 0 : i64, scratch_operands = 0 : i64, tpu.core_type = #tpu.core_type<tc>, window_params = [{transform_indices = @transform_0, window_bounds = array<i64: 3>}, {transform_indices = @transform_1, window_bounds = array<i64: 1, 16, 256>}, {transform_indices = @transform_2, window_bounds = array<i64: 1, 16, 256>}]} {
    %c0 = arith.constant 0 : index
    %c0_0 = arith.constant 0 : index
    %c0_1 = arith.constant 0 : index
    %0 = vector.load %arg2[%c0, %c0_0, %c0_1] : memref<1x16x256xf32, #tpu.memory_space<vmem>>, vector<1x16x256xf32>
    %cst = arith.constant dense<0.000000e+00> : vector<1x16xf32>
    %1 = vector.multi_reduction <add>, %0, %cst [2] : vector<1x16x256xf32> to vector<1x16xf32>
    %2 = vector.shape_cast %1 : vector<1x16xf32> to vector<1x16x1xf32>
    %cst_2 = arith.constant 3.906250e-03 : f32
    %3 = vector.broadcast %cst_2 : f32 to vector<1x16x1xf32>
    %4 = arith.mulf %2, %3 : vector<1x16x1xf32>
    %cst_3 = arith.constant 0.000000e+00 : f32
    %5 = vector.broadcast %cst_3 : f32 to vector<1x1x1xf32>
    %6 = tpu.concatenate %5, %4, %5 in 1 : vector<1x1x1xf32>, vector<1x16x1xf32>, vector<1x1x1xf32> -> vector<1x18x1xf32>
    %cst_4 = arith.constant 0.000000e+00 : f32
    %7 = vector.broadcast %cst_4 : f32 to vector<1x16x1xf32>
    %c0_5 = arith.constant 0 : index
    %8 = memref.load %arg1[%c0_5] : memref<3xf32, #tpu.memory_space<smem>>
    %9 = vector.extract_strided_slice %6 {offsets = [0, 0, 0], sizes = [1, 16, 1], strides = [1, 1, 1]} : vector<1x18x1xf32> to vector<1x16x1xf32>
    %10 = vector.broadcast %8 : f32 to vector<1x16x1xf32>
    %11 = arith.mulf %10, %9 : vector<1x16x1xf32>
    %12 = arith.addf %7, %11 : vector<1x16x1xf32>
    %c1 = arith.constant 1 : index
    %13 = memref.load %arg1[%c1] : memref<3xf32, #tpu.memory_space<smem>>
    %14 = vector.extract_strided_slice %6 {offsets = [0, 1, 0], sizes = [1, 16, 1], strides = [1, 1, 1]} : vector<1x18x1xf32> to vector<1x16x1xf32>
    %15 = vector.broadcast %13 : f32 to vector<1x16x1xf32>
    %16 = arith.mulf %15, %14 : vector<1x16x1xf32>
    %17 = arith.addf %12, %16 : vector<1x16x1xf32>
    %c2 = arith.constant 2 : index
    %18 = memref.load %arg1[%c2] : memref<3xf32, #tpu.memory_space<smem>>
    %19 = vector.extract_strided_slice %6 {offsets = [0, 2, 0], sizes = [1, 16, 1], strides = [1, 1, 1]} : vector<1x18x1xf32> to vector<1x16x1xf32>
    %20 = vector.broadcast %18 : f32 to vector<1x16x1xf32>
    %21 = arith.mulf %20, %19 : vector<1x16x1xf32>
    %22 = arith.addf %17, %21 : vector<1x16x1xf32>
    %23 = arith.negf %22 : vector<1x16x1xf32>
    %24 = math.exp %23 : vector<1x16x1xf32>
    %cst_6 = arith.constant 1.000000e+00 : f32
    %25 = vector.broadcast %cst_6 : f32 to vector<1x16x1xf32>
    %26 = arith.addf %25, %24 : vector<1x16x1xf32>
    %27 = arith.divf %25, %26 : vector<1x16x1xf32>
    %28 = vector.broadcast %27 : vector<1x16x1xf32> to vector<1x16x256xf32>
    %29 = arith.mulf %0, %28 : vector<1x16x256xf32>
    %c0_7 = arith.constant 0 : index
    %c0_8 = arith.constant 0 : index
    %c0_9 = arith.constant 0 : index
    %30 = vector.load %arg3[%c0_7, %c0_8, %c0_9] : memref<1x16x256xf32, #tpu.memory_space<vmem>>, vector<1x16x256xf32>
    tpu.vector_store %arg3[%c0_7, %c0_8, %c0_9], %29 {strides = array<i32>} : memref<1x16x256xf32, #tpu.memory_space<vmem>>, vector<1x16x256xf32>,
    return
  }
  func.func @transform_0(%arg0: i32) -> i32 {
    %c0_i32 = arith.constant 0 : i32
    %c0_i32_0 = arith.constant 0 : i32
    return %c0_i32 : i32
  }
  func.func @transform_1(%arg0: i32) -> (i32, i32, i32) {
    %c0_i32 = arith.constant 0 : i32
    %c0_i32_0 = arith.constant 0 : i32
    %c0_i32_1 = arith.constant 0 : i32
    return %arg0, %c0_i32, %c0_i32_0 : i32, i32, i32
  }
  func.func @transform_2(%arg0: i32) -> (i32, i32, i32) {
    %c0_i32 = arith.constant 0 : i32
    %c0_i32_0 = arith.constant 0 : i32
    %c0_i32_1 = arith.constant 0 : i32
    return %arg0, %c0_i32, %c0_i32_0 : i32, i32, i32
  }
}

</mosaic_0001>

<llo_original>
// kernel: tpu_custom_call.1
$region0: #{tpu_custom_call.1}
  #allocation0 [shape = 'u32[]', space=smem, size = 0x4, offset = 0x4, fixed_abs, tag = 'smem constant byte address 0x4 - core index']
  #allocation1 [shape = 'u32[144,128]{1,0:T(1,128)}', space=vmem, size = 0x12000, scoped, tag = 'internal scratch']
  %s0 = inlined_call_operand.hbm [shape: f32[3], index: 0, kind: input, shape index: {}]
  %s1 = inlined_call_operand.hbm [shape: f32[2,16,256], index: 1, kind: input, shape index: {}]
  %s2 = inlined_call_operand.hbm [shape: f32[2,16,256], index: 2, kind: output, shape index: {}]
  %s3 = sld [smem:[#allocation0]]
  $region49: #{tpu_custom_call.1} parent=0
    _
  %s5 = ssub.s32 1, %s3
  %s6 = scalar_select 0, %s5, %s3
  $region1: #{tpu_custom_call.1} parent=0
    #allocation2 [shape = 'u8[512]{0}', space=smem, size = 0x200, scoped, tag = 'input window, operand 0, single buffered']
    #allocation3 [shape = 's32[2]{0}', space=sflag, size = 0x8, scoped, tag = 'scoped memory for tpu_custom_call.1']
    #allocation4 [shape = 's32[2]{0}', space=sflag, size = 0x8, scoped, tag = 'scoped memory for tpu_custom_call.1']
    #allocation5 [shape = 's32[2]{0}', space=sflag, size = 0x8, scoped, tag = 'scoped memory for tpu_custom_call.1']
    #allocation6 [shape = 'u8[32768]{0}', space=vmem, size = 0x8000, scoped, tag = 'input window, operand 1']
    #allocation7 [shape = 'u8[32768]{0}', space=vmem, size = 0x8000, scoped, tag = 'output window, operand 0']
    %7 = vsyncpa [#allocation5], 0
    %8 = vsyncpa [#allocation3], 0
    %s9 = scalar_lea.sflag [#allocation3], 1
    %10 = vsyncpa %s9, 0
    %11 = vsyncpa [#allocation4], 0
    %s12 = scalar_lea.sflag [#allocation4], 1
    %13 = vsyncpa %s12, 0
    loop: start=0, step=1, limit=4
    $region2: #{tpu_custom_call.1} parent=1 // loop_pre_header
      _
    $region3: #{tpu_custom_call.1} parent=1 // loop_header
      %s15 = sphi 0, %s19
      %p16 = scmp.ge.s32.totalorder %s15, 4
      %s23 = sphi 0, %s23
      %s25 = sphi 0, %s23
      %s26 = sphi 0, %s25
      %s40 = sphi 0, %s26
      %s46 = sphi 0, %s48
      %s49 = sphi 0, %s46
      %s50 = sphi 0, %s49
      %s66 = sphi 0, %s50
      %s72 = sphi 0, %s74
      %s75 = sphi 0, %s72
      %s76 = sphi 0, %s75
      %s92 = sphi 0, %s76
    $region4: #{tpu_custom_call.1} parent=1 // loop_header_branch
      %18 = sbr.rel (%p16) target = $region8
    $region5: #{tpu_custom_call.1} parent=1 // loop_body
      %s20 = ssub.s32 %s15, 1
      %s21 = ssub.s32 %s15, 2
      %s22 = sadd.s32 %s15, 1
      %s24 = sadd.s32 %s23, 1
      %p27 = scmp.eq.s32.totalorder %s15, 1
      %p28 = scmp.ne.s32.totalorder %s23, %s25
      %p29 = scmp.eq.s32.totalorder %s15, 0
      %p30 = por %p28, %p29
      %p31 = scmp.ne.s32.totalorder %s23, %s25
      %p32 = scmp.eq.s32.totalorder %s20, 1
      %p33 = por %p31, %p32
      %p34 = scmp.ne.s32.totalorder %s25, %s26
      %p35 = scmp.eq.s32.totalorder %s20, 0
      %p36 = por %p34, %p35
      %p37 = scmp.ne.s32.totalorder %s25, %s26
      %p38 = scmp.eq.s32.totalorder %s21, 1
      %p39 = por %p37, %p38
      %p41 = scmp.ne.s32.totalorder %s26, %s40
      %p42 = scmp.eq.s32.totalorder %s21, 0
      %p43 = por %p41, %p42
      %s44 = ssub.s32 %s15, %s22
      %p45 = scmp.eq.s32.totalorder %s44, 0
      %s47 = sadd.s32 %s46, 1
      %s48 = scalar_select %p45, %s46, %s47
      %p51 = pneg %p45
      %p52 = scmp.eq.s32.totalorder %s15, 1
      %p53 = por %p51, %p52
      %p54 = scmp.ne.s32.totalorder %s46, %s49
      %p55 = scmp.eq.s32.totalorder %s15, 0
      %p56 = por %p54, %p55
      %p57 = scmp.ne.s32.totalorder %s46, %s49
      %p58 = scmp.eq.s32.totalorder %s20, 1
      %p59 = por %p57, %p58
      %p60 = scmp.ne.s32.totalorder %s49, %s50
      %p61 = scmp.eq.s32.totalorder %s20, 0
      %p62 = por %p60, %p61
      %p63 = scmp.ne.s32.totalorder %s49, %s50
      %p64 = scmp.eq.s32.totalorder %s21, 1
      %p65 = por %p63, %p64
      %p67 = scmp.ne.s32.totalorder %s50, %s66
      %p68 = scmp.eq.s32.totalorder %s21, 0
      %p69 = por %p67, %p68
      %s70 = ssub.s32 %s15, %s22
      %p71 = scmp.eq.s32.totalorder %s70, 0
      %s73 = sadd.s32 %s72, 1
      %s74 = scalar_select %p71, %s72, %s73
      %p77 = pneg %p71
      %p78 = scmp.eq.s32.totalorder %s15, 1
      %p79 = por %p77, %p78
      %p80 = scmp.ne.s32.totalorder %s72, %s75
      %p81 = scmp.eq.s32.totalorder %s15, 0
      %p82 = por %p80, %p81
      %p83 = scmp.ne.s32.totalorder %s72, %s75
      %p84 = scmp.eq.s32.totalorder %s20, 1
      %p85 = por %p83, %p84
      %p86 = scmp.ne.s32.totalorder %s75, %s76
      %p87 = scmp.eq.s32.totalorder %s20, 0
      %p88 = por %p86, %p87
      %p89 = scmp.ne.s32.totalorder %s75, %s76
      %p90 = scmp.eq.s32.totalorder %s21, 1
      %p91 = por %p89, %p90
      %p93 = scmp.ne.s32.totalorder %s76, %s92
      %p94 = scmp.eq.s32.totalorder %s21, 0
      %p95 = por %p93, %p94
      %p96 = scmp.le.s32.totalorder 1, %s15
      %p97 = scmp.lt.s32.totalorder %s15, 3
      %p98 = pnand %p96, %p97
      %p99 = pneg %p98
      // Predicated region
      $region9: #{tpu_custom_call.1} parent=5 // pred_check
        _
      $region10: #{tpu_custom_call.1} parent=5 // pred_check_branch
        %101 = sbr.rel (%p98) target = $region12
      $region11: #{tpu_custom_call.1} parent=5 // pred_region
        %s102 = ssub.s32 %s15, 1
        // Predicated region
        $region13: #{tpu_custom_call.1} parent=11 // pred_check
          %p103 = pneg %p36
        $region14: #{tpu_custom_call.1} parent=11 // pred_check_branch
          %105 = sbr.rel (%p103) target = $region16
        $region15: #{tpu_custom_call.1} parent=11 // pred_region
          %s107 = ssub.s32 16, 16
          %108 = vsyncadd [#allocation5], %s107
          %111 = dma.hbm_to_smem %s0, 16, [#allocation2], [#allocation5]
        $region16: #{tpu_custom_call.1} parent=11 // pred_fallthru
          _
      $region12: #{tpu_custom_call.1} parent=5 // pred_fallthru
        _
      %p112 = scmp.lt.s32.totalorder %s15, 2
      // Predicated region
      $region17: #{tpu_custom_call.1} parent=5 // pred_check
        %p113 = pneg %p112
      $region18: #{tpu_custom_call.1} parent=5 // pred_check_branch
        %115 = sbr.rel (%p113) target = $region20
      $region19: #{tpu_custom_call.1} parent=5 // pred_region
        // Predicated region
        $region21: #{tpu_custom_call.1} parent=19 // pred_check
          %p116 = pneg %p56
        $region22: #{tpu_custom_call.1} parent=19 // pred_check_branch
          %118 = sbr.rel (%p116) target = $region24
        $region23: #{tpu_custom_call.1} parent=19 // pred_region
          %s119 = sand.u32 %s46, 1
          %s120 = scalar_lea.sflag [#allocation3], %s119
          %s121 = sand.u32 %s46, 1
          %s122 = smul.addr %s121, 32
          %s123 = scalar_lea.vmem [#allocation6], %s122
          %s125 = ssub.s32 512, 512
          %126 = vsyncadd %s120, %s125
          %s127 = smul.addr %s15, 4
          %s128 = smul.addr %s127, 128
          %s129 = scalar_lea.hbm %s1, %s128
          %s130 = sshll.u32 %s123, 4
          %s131 = int_to_ptr.vmem [resolvable:$true] %s130
          %136 = dma.hbm_to_vmem [thread:$0]  %s129, 512, %s131, %s120, 256, 256, 16
        $region24: #{tpu_custom_call.1} parent=19 // pred_fallthru
          _
      $region20: #{tpu_custom_call.1} parent=5 // pred_fallthru
        _
      %p137 = scmp.le.s32.totalorder 1, %s15
      %p138 = scmp.lt.s32.totalorder %s15, 3
      %p139 = pnand %p137, %p138
      %p140 = pneg %p139
      // Predicated region
      $region25: #{tpu_custom_call.1} parent=5 // pred_check
        _
      $region26: #{tpu_custom_call.1} parent=5 // pred_check_branch
        %142 = sbr.rel (%p139) target = $region28
      $region27: #{tpu_custom_call.1} parent=5 // pred_region
        %s143 = ssub.s32 %s15, 1
        // Predicated region
        $region29: #{tpu_custom_call.1} parent=27 // pred_check
          %p144 = pneg %p36
        $region30: #{tpu_custom_call.1} parent=27 // pred_check_branch
          %146 = sbr.rel (%p144) target = $region32
        $region31: #{tpu_custom_call.1} parent=27 // pred_region
          %147 = dma.done [#allocation5], 16
        $region32: #{tpu_custom_call.1} parent=27 // pred_fallthru
          _
        %s148 = sand.u32 %s49, 1
        %s149 = scalar_lea.sflag [#allocation3], %s148
        %s150 = sand.u32 %s49, 1
        %s151 = smul.addr %s150, 32
        %s152 = scalar_lea.vmem [#allocation6], %s151
        // Predicated region
        $region33: #{tpu_custom_call.1} parent=27 // pred_check
          %p153 = pneg %p62
        $region34: #{tpu_custom_call.1} parent=27 // pred_check_branch
          %155 = sbr.rel (%p153) target = $region36
        $region35: #{tpu_custom_call.1} parent=27 // pred_region
          %156 = dma.done %s149, 512
        $region36: #{tpu_custom_call.1} parent=27 // pred_fallthru
          _
        %157 = sfence
        %p158 = pneg %p36
        %p159 = pneg %p33
        %s160 = sand.u32 %s49, 1
        %s161 = scalar_lea.sflag [#allocation3], %s160
        %s162 = sand.u32 %s49, 1
        %s163 = smul.addr %s162, 32
        %s164 = scalar_lea.vmem [#allocation6], %s163
        %p165 = pneg %p62
        %p166 = pneg %p59
        %p167 = pneg %p88
        %p168 = pneg %p85
        %s169 = sand.u32 %s75, 1
        %s170 = scalar_lea.sflag [#allocation4], %s169
        %s171 = sand.u32 %s75, 1
        %s172 = smul.addr %s171, 32
        %s173 = scalar_lea.vmem [#allocation7], %s172
        %v174 = vld [vmem:[%s152] sm:$0xff]
        %v175 = vld [vmem:[%s152 + $0x8] sm:$0xff]
        %v176 = vld [vmem:[%s152 + $0x10] sm:$0xff]
        %v177 = vld [vmem:[%s152 + $0x18] sm:$0xff]
        %v178 = vadd.f32 %v174, %v175
        %179 = vadd.xlane.f32.xlu0 %v178
        %v180 = vpop.xlane.xlu0 %179
        %v181 = vadd.f32 %v176, %v177
        %182 = vadd.xlane.f32.xlu0 %v181
        %v183 = vpop.xlane.xlu0 %182
        %v184 = vmul.f32 %v180, 0.00390625
        %v185 = vmul.f32 %v183, 0.00390625
        %vm188 = vcmask 1040384
        %v189 = vrot.slane %v184, 7
        %v190 = vrot.slane %v185, 7
        %v191 = vsel %vm188, %v189, %v190
        %v195 = vsel %vm188, 0.0, %v189
        %v196 = vsel %vm188, %v190, 0.0
        %s197 = sld [smem:[#allocation2]]
        %v198 = vstv %s197
        %v199 = vmul.f32 %v198, %v195
        %v200 = vmul.f32 %v198, %v191
        %v201 = vadd.f32 %v199, 0.0
        %v202 = vadd.f32 %v200, 0.0
        %s203 = sld [smem:[#allocation2 + $0x1]]
        %v204 = vstv %s203
        %v205 = vmul.f32 %v204, %v195
        %v206 = vmul.f32 %v204, %v191
        %v207 = vmul.f32 %v204, %v196
        %vm211 = vcmask 1046528
        %v212 = vrot.slane %v205, 1
        %v213 = vrot.slane %v206, 1
        %v214 = vsel %vm211, %v212, %v213
        %v215 = vrot.slane %v207, 1
        %v216 = vsel %vm211, %v213, %v215
        %v219 = vadd.f32 %v201, %v214
        %v220 = vadd.f32 %v202, %v216
        %s221 = sld [smem:[#allocation2 + $0x2]]
        %v222 = vstv %s221
        %v223 = vmul.f32 %v222, %v195
        %v224 = vmul.f32 %v222, %v191
        %v225 = vmul.f32 %v222, %v196
        %vm229 = vcmask 1045504
        %v230 = vrot.slane %v223, 2
        %v231 = vrot.slane %v224, 2
        %v232 = vsel %vm229, %v230, %v231
        %v233 = vrot.slane %v225, 2
        %v234 = vsel %vm229, %v231, %v233
        %v237 = vadd.f32 %v219, %v232
        %v238 = vadd.f32 %v220, %v234
        %v239 = vxor.u32 %v237, 2147483648
        %v240 = vxor.u32 %v238, 2147483648
        %v241 = vmul.f32 %v239, 1.442695
        %v242 = vpow.pop %v241
        %v243 = vmul.f32 %v240, 1.442695
        %v244 = vpow.pop %v243
        %v245 = vadd.f32 %v242, 1.0
        %v246 = vadd.f32 %v244, 1.0
        %v247 = vrcp.pop %v245
        %v248 = vmul.f32 1.0, %v247
        %v249 = vrcp.pop %v246
        %v250 = vmul.f32 1.0, %v249
        %252 = vset.pattern.permute.xlu0 0
        %253 = vperm.xlu0 %252, %v248
        %v254 = vpop.permute.xlu0 %253
        %257 = vset.pattern.permute.xlu0 0
        %258 = vperm.xlu0 %257, %v250
        %v259 = vpop.permute.xlu0 %258
        %v261 = vmul.f32 %v174, %v254
        %v262 = vmul.f32 %v175, %v254
        %v263 = vmul.f32 %v176, %v259
        %v264 = vmul.f32 %v177, %v259
        %265 = vst [vmem:[%s173] sm:$0xff] %v261
        %266 = vst [vmem:[%s173 + $0x8] sm:$0xff] %v262
        %267 = vst [vmem:[%s173 + $0x10] sm:$0xff] %v263
        %268 = vst [vmem:[%s173 + $0x18] sm:$0xff] %v264
        %s269 = sand.u32 %s75, 1
        %s270 = scalar_lea.sflag [#allocation4], %s269
        %s271 = sand.u32 %s75, 1
        %s272 = smul.addr %s271, 32
        %s273 = scalar_lea.vmem [#allocation7], %s272
        // Predicated region
        $region37: #{tpu_custom_call.1} parent=27 // pred_check
          %p274 = pneg %p85
        $region38: #{tpu_custom_call.1} parent=27 // pred_check_branch
          %276 = sbr.rel (%p274) target = $region40
        $region39: #{tpu_custom_call.1} parent=27 // pred_region
          %s278 = ssub.s32 512, 512
          %279 = vsyncadd %s270, %s278
          %s280 = smul.addr %s20, 4
          %s281 = smul.addr %s280, 128
          %s282 = scalar_lea.hbm %s2, %s281
          %s283 = sshll.u32 %s273, 4
          %s284 = int_to_ptr.vmem [resolvable:$true] %s283
          %289 = dma.vmem_to_hbm [thread:$0]  %s284, 512, %s282, %s270, 256, 256, 16
        $region40: #{tpu_custom_call.1} parent=27 // pred_fallthru
          _
      $region28: #{tpu_custom_call.1} parent=5 // pred_fallthru
        _
      %p290 = scmp.le.s32.totalorder 2, %s15
      // Predicated region
      $region41: #{tpu_custom_call.1} parent=5 // pred_check
        %p291 = pneg %p290
      $region42: #{tpu_custom_call.1} parent=5 // pred_check_branch
        %293 = sbr.rel (%p291) target = $region44
      $region43: #{tpu_custom_call.1} parent=5 // pred_region
        %s294 = ssub.s32 %s15, 2
        // Predicated region
        $region45: #{tpu_custom_call.1} parent=43 // pred_check
          %p295 = pneg %p91
        $region46: #{tpu_custom_call.1} parent=43 // pred_check_branch
          %297 = sbr.rel (%p295) target = $region48
        $region47: #{tpu_custom_call.1} parent=43 // pred_region
          %s298 = sand.u32 %s76, 1
          %s299 = scalar_lea.sflag [#allocation4], %s298
          %s300 = sand.u32 %s76, 1
          %s301 = smul.addr %s300, 32
          %s302 = scalar_lea.vmem [#allocation7], %s301
          %303 = dma.done %s299, 512
        $region48: #{tpu_custom_call.1} parent=43 // pred_fallthru
          _
      $region44: #{tpu_custom_call.1} parent=5 // pred_fallthru
        _
    $region6: #{tpu_custom_call.1} parent=1 // loop_footer
      %s19 = sadd.s32 1, %s15
    $region7: #{tpu_custom_call.1} parent=1 // loop_footer_branch
      %14 = sbr.rel target = $region3
    $region8: #{tpu_custom_call.1} parent=1 // loop_exit
      _
    %304 = vsyncpa [#allocation3], 1
    %s305 = scalar_lea.sflag [#allocation3], 1
    %306 = vsyncpa %s305, 1
    %307 = vsyncpa [#allocation4], 1
    %s308 = scalar_lea.sflag [#allocation4], 1
    %309 = vsyncpa %s308, 1
    %310 = vsyncpa [#allocation5], 1
    %s311 = scalar_lea.sflag [#allocation5], 1
    %312 = vsyncpa %s311, 1

</llo_original>
